<compile_context>
chip_gen: v7x
topology: tpu7x:2x2x1
jax: 0.10.0
libtpu: 0.0.40
codegen_flags: <defaults>
</compile_context>

<pallas_src>
import jax
import jax.numpy as jnp
import numpy as np
from jax.experimental import pallas as pl
from jax.experimental.pallas import tpu as pltpu

# --- module hyper-parameters (args.*) -----------------------------------
PATCH = 4                     # args.defense.patch_size
STRIDE = 4                    # args.defense.stride
NB_ATOMS = 32                 # args.dictionary.nb_atoms
IN_CH = 3                     # fixed by nn.Conv2d(3, ...)
ASSUMED_BUDGET = 8.0 / 255.0  # args.defense.assumed_budget
TRAIN_NOISE_GAMMA = 1.0       # args.defense.train_noise_gamma
NOISE_LEVEL = ASSUMED_BUDGET * TRAIN_NOISE_GAMMA  # self.training == True


# --- Pallas kernel -------------------------------------------------------
def encoder_kernel(w_ref, scale_ref, patches_ref, noise_ref, out_ref):
    """One batch block (BB batch elements) per grid step.

    w_ref:       (C, K)       flattened dictionary (conv weight)
    scale_ref:   (C, 1)       noise_level * sum(|w|, axis=K)  (precomputed)
    patches_ref: (BB, K, S)   im2col'd input patches (K = c_in*p*p, S = OH*OW)
    noise_ref:   (BB, C, S)   raw uniform noise (native NCHW-flattened layout)
    out_ref:     (BB, C, S)
    """
    w = w_ref[...]                                               # (C, K)
    scale = scale_ref[...]                                       # (C, 1)
    bb = patches_ref.shape[0]
    for b in range(bb):                                          # small static unroll
        # conv as a channels-major MXU matmul -> lane-dense (C, S) output
        codes = jnp.dot(w, patches_ref[b],
                        preferred_element_type=jnp.float32)      # (C, S)
        # noisy.add_noise:
        #   noise /= ||noise||_1 over spatial dims (per batch, per channel)
        #   noise *= noise_level * l1_norms[c]
        n = noise_ref[b]                                         # (C, S)
        n_l1 = jnp.sum(jnp.abs(n), axis=-1, keepdims=True)       # (C, 1)
        inv_l1 = pl.reciprocal(n_l1, approx=True)                # EUP, ~free
        out_ref[b] = codes + n * (scale * inv_l1)


# --- plain-JAX glue ------------------------------------------------------
def _im2col_nonoverlap(x, p):
    """Non-overlapping im2col (stride == patch).

    x: (B, C, H, W) NCHW  ->  (B, K, S) with K ordered (c_in, kh, kw)
    (matching torch conv.weight.reshape(C_out, -1)) and S = OH*OW row-major.
    Single crop + reshape + transpose: no per-patch slicing.
    """
    B, C, H, W = x.shape
    OH, OW = H // p, W // p
    xc = x[:, :, :OH * p, :OW * p]
    cols = xc.reshape(B, C, OH, p, OW, p)
    cols = jnp.transpose(cols, (0, 1, 3, 5, 2, 4))     # (B, c, kh, kw, OH, OW)
    return cols.reshape(B, C * p * p, OH * OW), OH, OW


def _pick_batch_block(B, bytes_per_b, vmem_budget=8 << 20):
    """Largest batch block <= cap that divides B, keeps >=2 grid steps when
    possible (v7x has 2 TensorCores sharded over 'parallel' axes) and stays
    under a conservative VMEM budget (sized for v7x's 64 MiB VMEM)."""
    cap = max(1, min(8, vmem_budget // max(1, 2 * bytes_per_b)))  # x2: dbl-buffer
    bb = 1
    for cand in range(1, cap + 1):
        if B % cand == 0 and (B // cand) >= min(2, B):
            bb = cand
    return bb


def encoder_forward(x, weight, noise, noise_level=NOISE_LEVEL):
    """x: (B,3,H,W) f32 NCHW; weight: (C_out,3,p,p); noise: (B,C_out,OH,OW)."""
    assert STRIDE == PATCH, "fast reshape-based im2col requires stride == patch"
    B, C_in, H, W = x.shape
    C_out = weight.shape[0]

    patches, OH, OW = _im2col_nonoverlap(x, PATCH)               # (B, K, S)
    S = OH * OW
    K = C_in * PATCH * PATCH

    w_flat = weight.reshape(C_out, K)                            # (C, K)
    # batch-invariant per-channel scale, hoisted out of the kernel
    scale = noise_level * jnp.sum(jnp.abs(w_flat), axis=1, keepdims=True)  # (C,1)
    noise_bcs = noise.reshape(B, C_out, S)                       # no transpose

    bytes_per_b = 4 * (K * S + 2 * C_out * S)                    # patches + noise + out
    BB = _pick_batch_block(B, bytes_per_b)
    grid = (B // BB,)

    out_bcs = pl.pallas_call(
        encoder_kernel,
        out_shape=jax.ShapeDtypeStruct((B, C_out, S), jnp.float32),
        grid_spec=pltpu.PrefetchScalarGridSpec(
            num_scalar_prefetch=0,
            grid=grid,
            in_specs=[
                pl.BlockSpec((C_out, K), lambda b: (0, 0)),       # weight: resident
                pl.BlockSpec((C_out, 1), lambda b: (0, 0)),       # scale:  resident
                pl.BlockSpec((BB, K, S), lambda b: (b, 0, 0)),
                pl.BlockSpec((BB, C_out, S), lambda b: (b, 0, 0)),
            ],
            out_specs=pl.BlockSpec((BB, C_out, S), lambda b: (b, 0, 0)),
        ),
        compiler_params=pltpu.CompilerParams(
            dimension_semantics=("parallel",)),
    )(w_flat, scale, patches, noise_bcs)

    # channels-major (B, C, S) -> NCHW is a pure reshape (no transpose)
    return out_bcs.reshape(B, C_out, OH, OW)


# --- pure-JAX reference for correctness check ----------------------------
def encoder_ref(x, weight, noise, noise_level=NOISE_LEVEL):
    codes = jax.lax.conv_general_dilated(
        x, weight, window_strides=(STRIDE, STRIDE), padding="VALID",
        dimension_numbers=("NCHW", "OIHW", "NCHW"),
        precision=jax.lax.Precision.HIGHEST)
    n_l1 = jnp.sum(jnp.abs(noise), axis=(2, 3), keepdims=True)   # (B,C,1,1)
    l1 = jnp.sum(jnp.abs(weight), axis=(1, 2, 3)).reshape(1, -1, 1, 1)
    return codes + (noise / n_l1) * (noise_level * l1)


if __name__ == "__main__":
    key = jax.random.PRNGKey(0)
    kx, kw, kn = jax.random.split(key, 3)

    B, H, W = 2, 16, 16
    OH = (H - PATCH) // STRIDE + 1
    OW = (W - PATCH) // STRIDE + 1

    x = jax.random.normal(kx, (B, IN_CH, H, W), dtype=jnp.float32)
    # deterministic "dictionary" conv weight (C_out, C_in, p, p), no bias
    weight = 0.1 * jax.random.normal(
        kw, (NB_ATOMS, IN_CH, PATCH, PATCH), dtype=jnp.float32)
    # torch.rand_like(x_conv) equivalent: uniform [0, 1) noise at conv-output shape
    noise = jax.random.uniform(kn, (B, NB_ATOMS, OH, OW), dtype=jnp.float32)

    out = encoder_forward(x, weight, noise)
    out = jax.block_until_ready(out)

    ref = encoder_ref(x, weight, noise)
    assert out.shape == (B, NB_ATOMS, OH, OW), out.shape
    np.testing.assert_allclose(np.asarray(out), np.asarray(ref),
                               rtol=1e-2, atol=1e-2)
    print("KERNEL_OK")
</pallas_src>

<mosaic_0001>
module attributes {stable_mosaic.version = 11 : i64} {
  func.func @encoder_kernel(%arg0: i32, %arg1: memref<32x48xf32, #tpu.memory_space<vmem>>, %arg2: memref<32x1xf32, #tpu.memory_space<vmem>>, %arg3: memref<1x48x16xf32, #tpu.memory_space<vmem>>, %arg4: memref<1x32x16xf32, #tpu.memory_space<vmem>>, %arg5: memref<1x32x16xf32, #tpu.memory_space<vmem>>) attributes {dimension_semantics = [#tpu.dimension_semantics<parallel>], iteration_bounds = array<i64: 2>, scalar_prefetch = 0 : i64, scratch_operands = 0 : i64, tpu.core_type = #tpu.core_type<tc>, window_params = [{pipeline_mode = #tpu.pipeline_mode<synchronous>, transform_indices = @transform_0, window_bounds = array<i64: 32, 48>}, {pipeline_mode = #tpu.pipeline_mode<synchronous>, transform_indices = @transform_1, window_bounds = array<i64: 32, 1>}, {transform_indices = @transform_2, window_bounds = array<i64: 1, 48, 16>}, {transform_indices = @transform_3, window_bounds = array<i64: 1, 32, 16>}, {transform_indices = @transform_4, window_bounds = array<i64: 1, 32, 16>}]} {
    %c0 = arith.constant 0 : index
    %c0_0 = arith.constant 0 : index
    %0 = vector.load %arg1[%c0, %c0_0] : memref<32x48xf32, #tpu.memory_space<vmem>>, vector<32x48xf32>
    %c0_1 = arith.constant 0 : index
    %c0_2 = arith.constant 0 : index
    %1 = vector.load %arg2[%c0_1, %c0_2] : memref<32x1xf32, #tpu.memory_space<vmem>>, vector<32x1xf32>
    %c0_3 = arith.constant 0 : index
    %c0_4 = arith.constant 0 : index
    %c0_5 = arith.constant 0 : index
    %2 = vector.load %arg3[%c0_3, %c0_4, %c0_5] : memref<1x48x16xf32, #tpu.memory_space<vmem>>, vector<1x48x16xf32>
    %3 = vector.shape_cast %2 : vector<1x48x16xf32> to vector<48x16xf32>
    %cst = arith.constant dense<0.000000e+00> : vector<32x16xf32>
    %4 = tpu.matmul %0, %3, %cst {dimension_numbers = #tpu.dot_dimension_numbers<[1], [0], [0], [1], [0, 0, 1, 1], [], []>} : vector<32x48xf32>, vector<48x16xf32>, vector<32x16xf32> -> vector<32x16xf32>
    %c0_6 = arith.constant 0 : index
    %c0_7 = arith.constant 0 : index
    %c0_8 = arith.constant 0 : index
    %5 = vector.load %arg4[%c0_6, %c0_7, %c0_8] : memref<1x32x16xf32, #tpu.memory_space<vmem>>, vector<1x32x16xf32>
    %6 = vector.shape_cast %5 : vector<1x32x16xf32> to vector<32x16xf32>
    %7 = math.absf %6 : vector<32x16xf32>
    %cst_9 = arith.constant dense<0.000000e+00> : vector<32xf32>
    %8 = vector.multi_reduction <add>, %7, %cst_9 [1] : vector<32x16xf32> to vector<32xf32>
    %9 = vector.shape_cast %8 : vector<32xf32> to vector<32x1xf32>
    %10 = tpu.reciprocal %9 {approx = true} : vector<32x1xf32> -> vector<32x1xf32>
    %11 = arith.mulf %1, %10 : vector<32x1xf32>
    %12 = vector.broadcast %11 : vector<32x1xf32> to vector<32x16xf32>
    %13 = arith.mulf %6, %12 : vector<32x16xf32>
    %14 = arith.addf %4, %13 : vector<32x16xf32>
    %c0_10 = arith.constant 0 : index
    %c0_11 = arith.constant 0 : index
    %c0_12 = arith.constant 0 : index
    %15 = vector.load %arg5[%c0_10, %c0_11, %c0_12] : memref<1x32x16xf32, #tpu.memory_space<vmem>>, vector<1x32x16xf32>
    %16 = vector.shape_cast %15 : vector<1x32x16xf32> to vector<32x16xf32>
    %17 = vector.shape_cast %14 : vector<32x16xf32> to vector<1x32x16xf32>
    tpu.vector_store %arg5[%c0_10, %c0_11, %c0_12], %17 {strides = array<i32>} : memref<1x32x16xf32, #tpu.memory_space<vmem>>, vector<1x32x16xf32>,
    return
  }
  func.func @transform_0(%arg0: i32) -> (i32, i32) {
    %c0_i32 = arith.constant 0 : i32
    %c0_i32_0 = arith.constant 0 : i32
    %c0_i32_1 = arith.constant 0 : i32
    return %c0_i32, %c0_i32_0 : i32, i32
  }
  func.func @transform_1(%arg0: i32) -> (i32, i32) {
    %c0_i32 = arith.constant 0 : i32
    %c0_i32_0 = arith.constant 0 : i32
    %c0_i32_1 = arith.constant 0 : i32
    return %c0_i32, %c0_i32_0 : i32, i32
  }
  func.func @transform_2(%arg0: i32) -> (i32, i32, i32) {
    %c0_i32 = arith.constant 0 : i32
    %c0_i32_0 = arith.constant 0 : i32
    %c0_i32_1 = arith.constant 0 : i32
    return %arg0, %c0_i32, %c0_i32_0 : i32, i32, i32
  }
  func.func @transform_3(%arg0: i32) -> (i32, i32, i32) {
    %c0_i32 = arith.constant 0 : i32
    %c0_i32_0 = arith.constant 0 : i32
    %c0_i32_1 = arith.constant 0 : i32
    return %arg0, %c0_i32, %c0_i32_0 : i32, i32, i32
  }
  func.func @transform_4(%arg0: i32) -> (i32, i32, i32) {
    %c0_i32 = arith.constant 0 : i32
    %c0_i32_0 = arith.constant 0 : i32
    %c0_i32_1 = arith.constant 0 : i32
    return %arg0, %c0_i32, %c0_i32_0 : i32, i32, i32
  }
}

</mosaic_0001>

<llo_original>
// kernel: tpu_custom_call.1
$region0: #{tpu_custom_call.1}
  #allocation0 [shape = 'u32[]', space=smem, size = 0x4, offset = 0x4, fixed_abs, tag = 'smem constant byte address 0x4 - core index']
  #allocation1 [shape = 'u32[144,128]{1,0:T(1,128)}', space=vmem, size = 0x12000, scoped, tag = 'internal scratch']
  %s0 = inlined_call_operand.vmem [shape: f32[32,48], index: 0, kind: input, shape index: {}]
  %s1 = inlined_call_operand.vmem [shape: f32[32,1], index: 1, kind: input, shape index: {}]
  %s2 = inlined_call_operand.vmem [shape: f32[2,48,16], index: 2, kind: input, shape index: {}]
  %s3 = inlined_call_operand.vmem [shape: f32[2,32,16], index: 3, kind: input, shape index: {}]
  %s4 = inlined_call_operand.vmem [shape: f32[2,32,16], index: 4, kind: output, shape index: {}]
  %s5 = sld [smem:[#allocation0]]
  $region49: #{tpu_custom_call.1} parent=0
    _
  %s7 = ssub.s32 1, %s5
  %s8 = scalar_select 0, %s7, %s5
  loop: start=0, step=1, limit=4
  $region2: #{tpu_custom_call.1} parent=0 // loop_pre_header
    _
  $region3: #{tpu_custom_call.1} parent=0 // loop_header
    %s10 = sphi 0, %s14
    %p11 = scmp.ge.s32.totalorder %s10, 4
    %s18 = sphi 0, %s18
    %s20 = sphi 0, %s18
    %s21 = sphi 0, %s20
    %s35 = sphi 0, %s21
    %s39 = sphi 0, %s39
    %s41 = sphi 0, %s39
    %s42 = sphi 0, %s41
    %s56 = sphi 0, %s42
    %s62 = sphi 0, %s64
    %s65 = sphi 0, %s62
    %s66 = sphi 0, %s65
    %s82 = sphi 0, %s66
    %s88 = sphi 0, %s90
    %s91 = sphi 0, %s88
    %s92 = sphi 0, %s91
    %s108 = sphi 0, %s92
    %s114 = sphi 0, %s116
    %s117 = sphi 0, %s114
    %s118 = sphi 0, %s117
    %s134 = sphi 0, %s118
  $region4: #{tpu_custom_call.1} parent=0 // loop_header_branch
    %13 = sbr.rel (%p11) target = $region8
  $region5: #{tpu_custom_call.1} parent=0 // loop_body
    %s15 = ssub.s32 %s10, 1
    %s16 = ssub.s32 %s10, 2
    %s17 = sadd.s32 %s10, 1
    %s19 = sadd.s32 %s18, 1
    %p22 = scmp.eq.s32.totalorder %s10, 1
    %p23 = scmp.ne.s32.totalorder %s18, %s20
    %p24 = scmp.eq.s32.totalorder %s10, 0
    %p25 = por %p23, %p24
    %p26 = scmp.ne.s32.totalorder %s18, %s20
    %p27 = scmp.eq.s32.totalorder %s15, 1
    %p28 = por %p26, %p27
    %p29 = scmp.ne.s32.totalorder %s20, %s21
    %p30 = scmp.eq.s32.totalorder %s15, 0
    %p31 = por %p29, %p30
    %p32 = scmp.ne.s32.totalorder %s20, %s21
    %p33 = scmp.eq.s32.totalorder %s16, 1
    %p34 = por %p32, %p33
    %p36 = scmp.ne.s32.totalorder %s21, %s35
    %p37 = scmp.eq.s32.totalorder %s16, 0
    %p38 = por %p36, %p37
    %s40 = sadd.s32 %s39, 1
    %p43 = scmp.eq.s32.totalorder %s10, 1
    %p44 = scmp.ne.s32.totalorder %s39, %s41
    %p45 = scmp.eq.s32.totalorder %s10, 0
    %p46 = por %p44, %p45
    %p47 = scmp.ne.s32.totalorder %s39, %s41
    %p48 = scmp.eq.s32.totalorder %s15, 1
    %p49 = por %p47, %p48
    %p50 = scmp.ne.s32.totalorder %s41, %s42
    %p51 = scmp.eq.s32.totalorder %s15, 0
    %p52 = por %p50, %p51
    %p53 = scmp.ne.s32.totalorder %s41, %s42
    %p54 = scmp.eq.s32.totalorder %s16, 1
    %p55 = por %p53, %p54
    %p57 = scmp.ne.s32.totalorder %s42, %s56
    %p58 = scmp.eq.s32.totalorder %s16, 0
    %p59 = por %p57, %p58
    %s60 = ssub.s32 %s10, %s17
    %p61 = scmp.eq.s32.totalorder %s60, 0
    %s63 = sadd.s32 %s62, 1
    %s64 = scalar_select %p61, %s62, %s63
    %p67 = pneg %p61
    %p68 = scmp.eq.s32.totalorder %s10, 1
    %p69 = por %p67, %p68
    %p70 = scmp.ne.s32.totalorder %s62, %s65
    %p71 = scmp.eq.s32.totalorder %s10, 0
    %p72 = por %p70, %p71
    %p73 = scmp.ne.s32.totalorder %s62, %s65
    %p74 = scmp.eq.s32.totalorder %s15, 1
    %p75 = por %p73, %p74
    %p76 = scmp.ne.s32.totalorder %s65, %s66
    %p77 = scmp.eq.s32.totalorder %s15, 0
    %p78 = por %p76, %p77
    %p79 = scmp.ne.s32.totalorder %s65, %s66
    %p80 = scmp.eq.s32.totalorder %s16, 1
    %p81 = por %p79, %p80
    %p83 = scmp.ne.s32.totalorder %s66, %s82
    %p84 = scmp.eq.s32.totalorder %s16, 0
    %p85 = por %p83, %p84
    %s86 = ssub.s32 %s10, %s17
    %p87 = scmp.eq.s32.totalorder %s86, 0
    %s89 = sadd.s32 %s88, 1
    %s90 = scalar_select %p87, %s88, %s89
    %p93 = pneg %p87
    %p94 = scmp.eq.s32.totalorder %s10, 1
    %p95 = por %p93, %p94
    %p96 = scmp.ne.s32.totalorder %s88, %s91
    %p97 = scmp.eq.s32.totalorder %s10, 0
    %p98 = por %p96, %p97
    %p99 = scmp.ne.s32.totalorder %s88, %s91
    %p100 = scmp.eq.s32.totalorder %s15, 1
    %p101 = por %p99, %p100
    %p102 = scmp.ne.s32.totalorder %s91, %s92
    %p103 = scmp.eq.s32.totalorder %s15, 0
    %p104 = por %p102, %p103
    %p105 = scmp.ne.s32.totalorder %s91, %s92
    %p106 = scmp.eq.s32.totalorder %s16, 1
    %p107 = por %p105, %p106
    %p109 = scmp.ne.s32.totalorder %s92, %s108
    %p110 = scmp.eq.s32.totalorder %s16, 0
    %p111 = por %p109, %p110
    %s112 = ssub.s32 %s10, %s17
    %p113 = scmp.eq.s32.totalorder %s112, 0
    %s115 = sadd.s32 %s114, 1
    %s116 = scalar_select %p113, %s114, %s115
    %p119 = pneg %p113
    %p120 = scmp.eq.s32.totalorder %s10, 1
    %p121 = por %p119, %p120
    %p122 = scmp.ne.s32.totalorder %s114, %s117
    %p123 = scmp.eq.s32.totalorder %s10, 0
    %p124 = por %p122, %p123
    %p125 = scmp.ne.s32.totalorder %s114, %s117
    %p126 = scmp.eq.s32.totalorder %s15, 1
    %p127 = por %p125, %p126
    %p128 = scmp.ne.s32.totalorder %s117, %s118
    %p129 = scmp.eq.s32.totalorder %s15, 0
    %p130 = por %p128, %p129
    %p131 = scmp.ne.s32.totalorder %s117, %s118
    %p132 = scmp.eq.s32.totalorder %s16, 1
    %p133 = por %p131, %p132
    %p135 = scmp.ne.s32.totalorder %s118, %s134
    %p136 = scmp.eq.s32.totalorder %s16, 0
    %p137 = por %p135, %p136
    %p138 = scmp.le.s32.totalorder 1, %s10
    %p139 = scmp.lt.s32.totalorder %s10, 3
    %p140 = pnand %p138, %p139
    %p141 = pneg %p140
    // Predicated region
    $region9: #{tpu_custom_call.1} parent=5 // pred_check
      _
    $region10: #{tpu_custom_call.1} parent=5 // pred_check_branch
      %143 = sbr.rel (%p140) target = $region12
    $region11: #{tpu_custom_call.1} parent=5 // pred_region
      %s144 = ssub.s32 %s10, 1
      // Predicated region
      $region13: #{tpu_custom_call.1} parent=11 // pred_check
        %p145 = pneg %p31
      $region14: #{tpu_custom_call.1} parent=11 // pred_check_branch
        %147 = sbr.rel (%p145) target = $region16
      $region15: #{tpu_custom_call.1} parent=11 // pred_region
        _
      $region16: #{tpu_custom_call.1} parent=11 // pred_fallthru
        _
      // Predicated region
      $region17: #{tpu_custom_call.1} parent=11 // pred_check
        %p148 = pneg %p52
      $region18: #{tpu_custom_call.1} parent=11 // pred_check_branch
        %150 = sbr.rel (%p148) target = $region20
      $region19: #{tpu_custom_call.1} parent=11 // pred_region
        _
      $region20: #{tpu_custom_call.1} parent=11 // pred_fallthru
        _
    $region12: #{tpu_custom_call.1} parent=5 // pred_fallthru
      _
    %p151 = scmp.lt.s32.totalorder %s10, 2
    // Predicated region
    $region21: #{tpu_custom_call.1} parent=5 // pred_check
      %p152 = pneg %p151
    $region22: #{tpu_custom_call.1} parent=5 // pred_check_branch
      %154 = sbr.rel (%p152) target = $region24
    $region23: #{tpu_custom_call.1} parent=5 // pred_region
      // Predicated region
      $region25: #{tpu_custom_call.1} parent=23 // pred_check
        %p155 = pneg %p72
      $region26: #{tpu_custom_call.1} parent=23 // pred_check_branch
        %157 = sbr.rel (%p155) target = $region28
      $region27: #{tpu_custom_call.1} parent=23 // pred_region
        %p158 = scmp.lt.s32.totalorder %s10, 1
        %s159 = scalar_select %p158, %s10, 1
        %s160 = smul.addr %s159, 6
        %s161 = smul.addr %s160, 8
        %s162 = scalar_lea.vmem %s2, %s161
      $region28: #{tpu_custom_call.1} parent=23 // pred_fallthru
        _
      // Predicated region
      $region29: #{tpu_custom_call.1} parent=23 // pred_check
        %p163 = pneg %p98
      $region30: #{tpu_custom_call.1} parent=23 // pred_check_branch
        %165 = sbr.rel (%p163) target = $region32
      $region31: #{tpu_custom_call.1} parent=23 // pred_region
        %p166 = scmp.lt.s32.totalorder %s10, 1
        %s167 = scalar_select %p166, %s10, 1
        %s168 = smul.addr %s167, 4
        %s169 = smul.addr %s168, 8
        %s170 = scalar_lea.vmem %s3, %s169
      $region32: #{tpu_custom_call.1} parent=23 // pred_fallthru
        _
    $region24: #{tpu_custom_call.1} parent=5 // pred_fallthru
      _
    %p171 = scmp.le.s32.totalorder 1, %s10
    %p172 = scmp.lt.s32.totalorder %s10, 3
    %p173 = pnand %p171, %p172
    %p174 = pneg %p173
    // Predicated region
    $region33: #{tpu_custom_call.1} parent=5 // pred_check
      _
    $region34: #{tpu_custom_call.1} parent=5 // pred_check_branch
      %176 = sbr.rel (%p173) target = $region36
    $region35: #{tpu_custom_call.1} parent=5 // pred_region
      %s177 = ssub.s32 %s10, 1
      %p178 = pneg %p31
      %p179 = pneg %p28
      %p180 = pneg %p52
      %p181 = pneg %p49
      %p182 = scmp.lt.s32.totalorder %s15, 1
      %s183 = scalar_select %p182, %s15, 1
      %s184 = smul.addr %s183, 6
      %s185 = smul.addr %s184, 8
      %s186 = scalar_lea.vmem %s2, %s185
      %p187 = pneg %p78
      %p188 = pneg %p75
      %p189 = scmp.lt.s32.totalorder %s15, 1
      %s190 = scalar_select %p189, %s15, 1
      %s191 = smul.addr %s190, 4
      %s192 = smul.addr %s191, 8
      %s193 = scalar_lea.vmem %s3, %s192
      %p194 = pneg %p104
      %p195 = pneg %p101
      %p196 = pneg %p130
      %p197 = pneg %p127
      %p198 = scmp.lt.s32.totalorder %s15, 1
      %s199 = scalar_select %p198, %s15, 1
      %s200 = smul.addr %s199, 4
      %s201 = smul.addr %s200, 8
      %s202 = scalar_lea.vmem %s4, %s201
      %p203 = scmp.lt.s32.totalorder %s15, 1
      %s204 = scalar_select %p203, %s15, 1
      %s205 = smul.addr %s204, 6
      %s206 = smul.addr %s205, 8
      %s207 = scalar_lea.vmem %s2, %s206
      %p208 = scmp.lt.s32.totalorder %s15, 1
      %s209 = scalar_select %p208, %s15, 1
      %s210 = smul.addr %s209, 4
      %s211 = smul.addr %s210, 8
      %s212 = scalar_lea.vmem %s3, %s211
      %p213 = scmp.lt.s32.totalorder %s15, 1
      %s214 = scalar_select %p213, %s15, 1
      %s215 = smul.addr %s214, 4
      %s216 = smul.addr %s215, 8
      %s217 = scalar_lea.vmem %s4, %s216
      %v218 = vld [vmem:[%s0] sm:$0xff]
      %v219 = vld [vmem:[%s0 + $0x8] sm:$0xff]
      %v220 = vld [vmem:[%s0 + $0x10] sm:$0xff]
      %v221 = vld [vmem:[%s0 + $0x18] sm:$0xff]
      %v222 = vld [vmem:[%s1] sm:$0xff]
      %v223 = vld [vmem:[%s1 + $0x8] sm:$0xff]
      %v224 = vld [vmem:[%s1 + $0x10] sm:$0xff]
      %v225 = vld [vmem:[%s1 + $0x18] sm:$0xff]
      %v226 = vld [vmem:[%s207] sm:$0xff]
      %v227 = vld [vmem:[%s207 + $0x8] sm:$0xff]
      %v228 = vld [vmem:[%s207 + $0x10] sm:$0xff]
      %v229 = vld [vmem:[%s207 + $0x18] sm:$0xff]
      %v230 = vld [vmem:[%s207 + $0x20] sm:$0xff]
      %v231 = vld [vmem:[%s207 + $0x28] sm:$0xff]
      %v232 = vld [vmem:[%s212] sm:$0xff]
      %v233 = vld [vmem:[%s212 + $0x8] sm:$0xff]
      %v234 = vld [vmem:[%s212 + $0x10] sm:$0xff]
      %v235 = vld [vmem:[%s212 + $0x18] sm:$0xff]
      %v236 = vand.u32 2147483647, %v232
      %v237 = vand.u32 2147483647, %v233
      %v238 = vand.u32 2147483647, %v234
      %v239 = vand.u32 2147483647, %v235
      %vm240 = vcmask 130048
      %v241 = vsel %vm240, %v236, 0.0
      %242 = vadd.xlane.f32.xlu0 %v241
      %v243 = vpop.xlane.xlu0 %242
      %v244 = vsel %vm240, %v237, 0.0
      %245 = vadd.xlane.f32.xlu0 %v244
      %v246 = vpop.xlane.xlu0 %245
      %v247 = vsel %vm240, %v238, 0.0
      %248 = vadd.xlane.f32.xlu0 %v247
      %v249 = vpop.xlane.xlu0 %248
      %v250 = vsel %vm240, %v239, 0.0
      %251 = vadd.xlane.f32.xlu0 %v250
      %v252 = vpop.xlane.xlu0 %251
      %v253 = vrcp.pop %v243
      %v254 = vrcp.pop %v246
      %v255 = vrcp.pop %v249
      %v256 = vrcp.pop %v252
      %v257 = vmul.f32 %v222, %v253
      %v258 = vmul.f32 %v223, %v254
      %v259 = vmul.f32 %v224, %v255
      %v260 = vmul.f32 %v225, %v256
      %262 = vset.pattern.permute.xlu0 0
      %263 = vperm.xlu0 %262, %v257
      %v264 = vpop.permute.xlu0 %263
      %267 = vset.pattern.permute.xlu0 0
      %268 = vperm.xlu0 %267, %v258
      %v269 = vpop.permute.xlu0 %268
      %272 = vset.pattern.permute.xlu0 0
      %273 = vperm.xlu0 %272, %v259
      %v274 = vpop.permute.xlu0 %273
      %277 = vset.pattern.permute.xlu0 0
      %278 = vperm.xlu0 %277, %v260
      %v279 = vpop.permute.xlu0 %278
      %v281 = vmul.f32 %v232, %v264
      %v282 = vmul.f32 %v233, %v269
      %v283 = vmul.f32 %v234, %v274
      %v284 = vmul.f32 %v235, %v279
      %vm285 = vcmask 392192
      %v287 = vsel %vm285, %v218, 0
      %v290 = vsel %vm285, %v219, 0
      %v293 = vsel %vm285, %v220, 0
      %v296 = vsel %vm285, %v221, 0
      %298 = vmatprep.subr.mxu0 0.0
      %299 = vmatpush1.msra.mxu0 %v226
      %300 = vmatprep.subr.mxu0 0.0
      %301 = vmatpush1.msra.mxu0 %v227
      %302 = vmatprep.subr.mxu0 0.0
      %303 = vmatpush1.msra.mxu0 %v228
      %304 = vmatprep.subr.mxu0 0.0
      %305 = vmatpush1.msra.mxu0 %v229
      %306 = vmatprep.subr.mxu0 0.0
      %307 = vmatpush1.msra.mxu0 %v230
      %308 = vmatprep.subr.mxu0 0.0
      %309 = vmatpush1.msra.mxu0 %v231
      %310 = vmatprep.subr.mxu0 0.0
      %311 = vmatpush1.msra.mxu0 0.0
      %312 = vmatprep.subr.mxu0 0.0
      %313 = vmatpush1.msra.mxu0 0.0
      %314 = vmatprep.subr.mxu0 0.0
      %315 = vmatpush1.msra.mxu0 0.0
      %316 = vmatprep.subr.mxu0 0.0
      %317 = vmatpush1.msra.mxu0 0.0
      %318 = vmatprep.subr.mxu0 0.0
      %319 = vmatpush1.msra.mxu0 0.0
      %320 = vmatprep.subr.mxu0 0.0
      %321 = vmatpush1.msra.mxu0 0.0
      %322 = vmatprep.subr.mxu0 0.0
      %323 = vmatpush1.msra.mxu0 0.0
      %324 = vmatprep.subr.mxu0 0.0
      %325 = vmatpush1.msra.mxu0 0.0
      %326 = vmatprep.subr.mxu0 0.0
      %327 = vmatpush1.msra.mxu0 0.0
      %328 = vmatprep.subr.mxu0 0.0
      %329 = vmatpush1.msra.mxu0 0.0
      %330 = vmatprep.subr.mxu0 0.0
      %331 = vmatpush1.msra.mxu0 0.0
      %332 = vmatprep.subr.mxu0 0.0
      %333 = vmatpush1.msra.mxu0 0.0
      %334 = vmatprep.subr.mxu0 0.0
      %335 = vmatpush1.msra.mxu0 0.0
      %336 = vmatprep.subr.mxu0 0.0
      %337 = vmatpush1.msra.mxu0 0.0
      %338 = vmatprep.subr.mxu0 0.0
      %339 = vmatpush1.msra.mxu0 0.0
      %340 = vmatprep.subr.mxu0 0.0
      %341 = vmatpush1.msra.mxu0 0.0
      %342 = vmatprep.subr.mxu0 0.0
      %343 = vmatpush1.msra.mxu0 0.0
      %344 = vmatprep.subr.mxu0 0.0
      %345 = vmatpush1.msra.mxu0 0.0
      %346 = vmatprep.subr.mxu0 0.0
      %347 = vmatpush1.msra.mxu0 0.0
      %348 = vmatprep.subr.mxu0 0.0
      %349 = vmatpush1.msra.mxu0 0.0
      %350 = vmatprep.subr.mxu0 0.0
      %351 = vmatpush1.msra.mxu0 0.0
      %352 = vmatprep.subr.mxu0 0.0
      %353 = vmatpush1.msra.mxu0 0.0
      %354 = vmatprep.subr.mxu0 0.0
      %355 = vmatpush1.msra.mxu0 0.0
      %356 = vmatprep.subr.mxu0 0.0
      %357 = vmatpush1.msra.mxu0 0.0
      %358 = vmatprep.subr.mxu0 0.0
      %359 = vmatpush1.msra.mxu0 0.0
      %360 = vmatprep.subr.mxu0 0.0
      %361 = vmatpush1.msra.mxu0 0.0
      %362 = vmatprep.mubr.f32.mxu0 0.0
      %363 = vmatmul.mubr.f32.gmra.mrb[0].mxu0 %v287
      %v364 = vpop.f32.mrb[0].mxu0
      %v365 = vadd.f32 %v281, %v364
      %v366 = vpop.f32.mrb[0].mxu0
      %367 = vmatprep.mubr.f32.mxu0 0.0
      %368 = vmatmul.mubr.f32.gmra.mrb[0].mxu0 %v290
      %v369 = vpop.f32.mrb[0].mxu0
      %v370 = vadd.f32 %v282, %v369
      %v371 = vpop.f32.mrb[0].mxu0
      %372 = vmatprep.mubr.f32.mxu0 0.0
      %373 = vmatmul.mubr.f32.gmra.mrb[0].mxu0 %v293
      %v374 = vpop.f32.mrb[0].mxu0
      %v375 = vadd.f32 %v283, %v374
      %v376 = vpop.f32.mrb[0].mxu0
      %377 = vmatprep.mubr.f32.mxu0 0.0
      %378 = vmatmul.mubr.f32.gmra.mrb[0].mxu0 %v296
      %v379 = vpop.f32.mrb[0].mxu0
      %v380 = vadd.f32 %v284, %v379
      %v381 = vpop.f32.mrb[0].mxu0
      %382 = vdwg.mxu0
      %383 = vst.msk [vmem:[%s217] sm:$0xff] %vm240, %v365
      %384 = vst.msk [vmem:[%s217 + $0x8] sm:$0xff] %vm240, %v370
      %385 = vst.msk [vmem:[%s217 + $0x10] sm:$0xff] %vm240, %v375
      %386 = vst.msk [vmem:[%s217 + $0x18] sm:$0xff] %vm240, %v380
      %p387 = scmp.lt.s32.totalorder %s15, 1
      %s388 = scalar_select %p387, %s15, 1
      %s389 = smul.addr %s388, 4
      %s390 = smul.addr %s389, 8
      %s391 = scalar_lea.vmem %s4, %s390
      // Predicated region
      $region37: #{tpu_custom_call.1} parent=35 // pred_check
        %p392 = pneg %p127
      $region38: #{tpu_custom_call.1} parent=35 // pred_check_branch
        %394 = sbr.rel (%p392) target = $region40
      $region39: #{tpu_custom_call.1} parent=35 // pred_region
        _
      $region40: #{tpu_custom_call.1} parent=35 // pred_fallthru
        _
    $region36: #{tpu_custom_call.1} parent=5 // pred_fallthru
      _
    %p395 = scmp.le.s32.totalorder 2, %s10
    // Predicated region
    $region41: #{tpu_custom_call.1} parent=5 // pred_check
      %p396 = pneg %p395
    $region42: #{tpu_custom_call.1} parent=5 // pred_check_branch
      %398 = sbr.rel (%p396) target = $region44
    $region43: #{tpu_custom_call.1} parent=5 // pred_region
      %s399 = ssub.s32 %s10, 2
      // Predicated region
      $region45: #{tpu_custom_call.1} parent=43 // pred_check
        %p400 = pneg %p133
      $region46: #{tpu_custom_call.1} parent=43 // pred_check_branch
        %402 = sbr.rel (%p400) target = $region48
      $region47: #{tpu_custom_call.1} parent=43 // pred_region
        %p403 = scmp.lt.s32.totalorder %s16, 1
        %s404 = scalar_select %p403, %s16, 1
        %s405 = smul.addr %s404, 4
        %s406 = smul.addr %s405, 8
        %s407 = scalar_lea.vmem %s4, %s406
      $region48: #{tpu_custom_call.1} parent=43 // pred_fallthru
        _
    $region44: #{tpu_custom_call.1} parent=5 // pred_fallthru
      _
  $region6: #{tpu_custom_call.1} parent=0 // loop_footer
    %s14 = sadd.s32 1, %s10
  $region7: #{tpu_custom_call.1} parent=0 // loop_footer_branch
    %9 = sbr.rel target = $region3
  $region8: #{tpu_custom_call.1} parent=0 // loop_exit
    _

</llo_original>
